<compile_context>
chip_gen: v7x
topology: tpu7x:2x2x1
jax: 0.10.0
libtpu: 0.0.40
codegen_flags: <defaults>
</compile_context>

<pallas_src>
import math
import functools

import jax
import jax.numpy as jnp
from jax.experimental import pallas as pl
from jax.experimental.pallas import tpu as pltpu


def _round_up(a, b):
    return -(-a // b) * b


def _cdiv(a, b):
    return -(-a // b)


def _mp_conv_weight(w, eps=1e-4):
    """Effective forward weight of the MP Conv3d (kernel_size=1).

    PyTorch: normalize_weight(w, eps) / sqrt(fan_in)
      normalize_weight = unit-L2 rows * sqrt(fan_in)
    so the net forward weight is just unit-L2-normalized rows (written out
    explicitly for fidelity with the reference)."""
    dim_out = w.shape[0]
    w2d = w.reshape(dim_out, -1).astype(jnp.float32)
    fan_in = w2d.shape[1]
    norm = jnp.sqrt(jnp.sum(w2d * w2d, axis=-1, keepdims=True))
    normed = w2d / jnp.maximum(norm, eps)
    normed = normed * math.sqrt(fan_in)        # normalize_weight(...) scaling
    return normed / math.sqrt(fan_in)          # Conv3d.forward / sqrt(fan_in)


def _mpff_kernel(x_ref, w1_ref, w2_ref, o_ref, *, eps, res_scale):
    """One (C, ts) spatial tile of one batch element.

    x_ref : (C, ts)       input tile (spatial on lanes, channels on sublanes)
    w1_ref: (C_inner, C)  conv1 weight, PixelNorm's sqrt(C) pre-folded
    w2_ref: (C, C_inner)  conv2 weight, (1-t)/den and 1/0.596 pre-folded
    o_ref : (C, ts)       output tile (lane-dense, unmasked store)
    """
    x = x_ref[...].astype(jnp.float32)

    # PixelNorm over the channel axis: x / max(||x||_c, eps)   (sqrt(C) folded
    # into w1).  rsqrt(max(sumsq, eps^2)) == 1 / max(||x||, eps); runs on EUP.
    sumsq = jnp.sum(x * x, axis=0, keepdims=True)              # (1, ts)
    inv_norm = jax.lax.rsqrt(jnp.maximum(sumsq, eps * eps))
    xn = x * inv_norm                                          # (C, ts) f32

    # Pointwise conv1: (C_inner, C) @ (C, ts) -> (C_inner, ts).
    # bf16 MXU operands, f32 accumulation.
    h = jax.lax.dot_general(
        w1_ref[...].astype(jnp.bfloat16), xn.astype(jnp.bfloat16),
        (((1,), (0,)), ((), ())),
        preferred_element_type=jnp.float32)

    # MPSiLU (the 1/0.596 scale is folded into w2); f32 elementwise.
    h = h * jax.nn.sigmoid(h)

    # Pointwise conv2: (C, C_inner) @ (C_inner, ts) -> (C, ts).
    y = jax.lax.dot_general(
        w2_ref[...].astype(jnp.bfloat16), h.astype(jnp.bfloat16),
        (((1,), (0,)), ((), ())),
        preferred_element_type=jnp.float32)

    # MPAdd with the raw input as residual: (1-t)/den already folded into w2,
    # so only a single FMA with t/den remains.
    o_ref[...] = (y + x * jnp.float32(res_scale)).astype(o_ref.dtype)


def mp_feedforward(x_ncdhw, w1, w2, *, mp_add_t=0.3, eps=1e-4,
                   weights_dtype=jnp.bfloat16, out_dtype=None):
    """x_ncdhw: (B, C, D, H, W) f32.
       w1: (C_inner, C, 1, 1, 1) raw MP-conv weight (torch.randn init).
       w2: (C, C_inner, 1, 1, 1) raw MP-conv weight.
    Matmul operands are bf16 (f32 accumulation); set out_dtype=jnp.bfloat16 if
    the consumer tolerates a bf16 activation writeback."""
    B, C, D, H, W = x_ncdhw.shape
    dim_inner = w1.shape[0]
    S = D * H * W
    out_dtype = x_ncdhw.dtype if out_dtype is None else out_dtype

    t = float(mp_add_t)
    den = math.sqrt((1.0 - t) ** 2 + t ** 2)
    res_scale = t / den

    # --- weight prep (plain JAX, tiny): normalized rows + folded constants ---
    w1_mat = _mp_conv_weight(w1, eps) * math.sqrt(C)                 # (C_inner, C)
    w2_mat = _mp_conv_weight(w2, eps) * ((1.0 - t) / (den * 0.596))  # (C, C_inner)
    w1_mat = w1_mat.astype(weights_dtype)
    w2_mat = w2_mat.astype(weights_dtype)

    # --- layout: NCDHW -> (B, C, S); pure reshape, no transpose, no HBM copy ---
    x3 = x_ncdhw.reshape(B, C, S).astype(jnp.float32)

    # --- generation-aware VMEM budget -------------------------------------
    try:
        vmem_capacity = int(pltpu.get_tpu_info().vmem_capacity_bytes)
    except Exception:  # pragma: no cover - conservative fallback (v7x size)
        vmem_capacity = 64 << 20
    # ~48 MiB on 128 MiB chips (v5e/v6e), ~38 MiB on 64 MiB v7x.
    budget = min(48 << 20, int(0.6 * vmem_capacity))

    # --- VMEM footprint model ----------------------------------------------
    # Weights are single-buffered (pl.Buffered(1), grid-invariant index_map).
    w_itemsize = jnp.dtype(weights_dtype).itemsize
    weight_bytes = 2 * C * dim_inner * w_itemsize
    # Per spatial column (conservative):
    #   f32: 2x double-buffered input (2C) + 2x double-buffered output (2C)
    #        + xn copy (C) + y (C) + hidden h (C_inner)
    #   bf16 casts of matmul operands: xn (C) + h (C_inner)
    bytes_per_col = 4 * (2 * C + 2 * C + C + C + dim_inner) + 2 * (C + dim_inner)

    # --- spatial tiling: pad only to 128, rebalance ts to divide it ----------
    S128 = _round_up(S, 128)
    avail = max(budget - weight_bytes, bytes_per_col * 128)
    ts_budget = max(128, (avail // bytes_per_col) // 128 * 128)
    ts_budget = min(ts_budget, S128)
    n_tiles = _cdiv(S128, ts_budget)

    # v7x megacore: make sure there are >= 2 grid points when shapes allow.
    if B * n_tiles < 2 and (S128 // 128) >= 2:
        n_tiles = min(_cdiv(2, B), S128 // 128)

    ts = _round_up(_cdiv(S128, n_tiles), 128)
    S_pad = n_tiles * ts
    if S_pad != S:
        # Zero padding is numerically safe: zero columns stay exactly zero
        # through pixelnorm (clamped by eps), the convs, silu and MPAdd.
        x3 = jnp.pad(x3, ((0, 0), (0, 0), (0, S_pad - S)))

    # --- vmem limit derived from the actual footprint (+ headroom) ----------
    footprint = weight_bytes + ts * bytes_per_col
    vmem_limit = int(footprint * 1.3) + (4 << 20)
    vmem_limit = max(vmem_limit, 16 << 20)
    vmem_limit = min(vmem_limit, max(vmem_capacity - (8 << 20), 32 << 20))

    kernel = functools.partial(_mpff_kernel, eps=float(eps), res_scale=res_scale)

    out3 = pl.pallas_call(
        kernel,
        out_shape=jax.ShapeDtypeStruct((B, C, S_pad), out_dtype),
        grid_spec=pltpu.PrefetchScalarGridSpec(
            num_scalar_prefetch=0,
            grid=(B, n_tiles),
            in_specs=[
                # activations: (batch squeezed, C, ts) tile
                pl.BlockSpec((None, C, ts), lambda b, s: (b, 0, s)),
                # grid-invariant weights: single-buffered
                pl.BlockSpec((dim_inner, C), lambda b, s: (0, 0),
                             pipeline_mode=pl.Buffered(1)),
                pl.BlockSpec((C, dim_inner), lambda b, s: (0, 0),
                             pipeline_mode=pl.Buffered(1)),
            ],
            out_specs=pl.BlockSpec((None, C, ts), lambda b, s: (b, 0, s)),
        ),
        compiler_params=pltpu.CompilerParams(
            dimension_semantics=("parallel", "parallel"),  # megacore-shardable
            vmem_limit_bytes=vmem_limit,
        ),
    )(x3, w1_mat, w2_mat)

    if S_pad != S:
        out3 = out3[:, :, :S]
    return out3.reshape(B, C, D, H, W)


def _reference(x, w1, w2, *, mp_add_t=0.3, eps=1e-4):
    """Pure-JAX f32 reference matching the PyTorch forward (NCDHW layout)."""
    B, C, D, H, W = x.shape
    # PixelNorm(dim=1)
    n = jnp.sqrt(jnp.sum(x * x, axis=1, keepdims=True))
    xn = x / jnp.maximum(n, eps) * math.sqrt(C)
    # MP Conv3d (1x1x1) weights
    w1m = _mp_conv_weight(w1, eps)          # (C_inner, C)
    w2m = _mp_conv_weight(w2, eps)          # (C, C_inner)
    h = jnp.einsum('oc,bcdhw->bodhw', w1m, xn)
    h = h * jax.nn.sigmoid(h) / 0.596
    y = jnp.einsum('co,bodhw->bcdhw', w2m, h)
    t = mp_add_t
    return (y * (1.0 - t) + x * t) / math.sqrt((1.0 - t) ** 2 + t ** 2)


if __name__ == "__main__":
    key = jax.random.PRNGKey(0)
    k_x, k_w1, k_w2 = jax.random.split(key, 3)

    dim, mult = 4, 4
    dim_inner = dim * mult
    B, D, H, W = 2, 8, 8, 8

    x = jax.random.normal(k_x, (B, dim, D, H, W), dtype=jnp.float32)
    w1 = jax.random.normal(k_w1, (dim_inner, dim, 1, 1, 1), dtype=jnp.float32)
    w2 = jax.random.normal(k_w2, (dim, dim_inner, 1, 1, 1), dtype=jnp.float32)

    out = jax.block_until_ready(mp_feedforward(x, w1, w2))
    ref = _reference(x, w1, w2)

    assert out.shape == x.shape
    # bf16 MXU operands -> looser tolerance than the pure-f32 path.
    assert jnp.allclose(out, ref, atol=5e-2, rtol=5e-2), "mismatch vs reference"

    print("KERNEL_OK")
</pallas_src>

<mosaic_0001>
module attributes {stable_mosaic.version = 11 : i64} {
  func.func @_mpff_kernel(%arg0: i32, %arg1: i32, %arg2: memref<1x4x512xf32, #tpu.memory_space<vmem>>, %arg3: memref<16x4xbf16, #tpu.memory_space<vmem>>, %arg4: memref<4x16xbf16, #tpu.memory_space<vmem>>, %arg5: memref<1x4x512xf32, #tpu.memory_space<vmem>>) attributes {dimension_semantics = [#tpu.dimension_semantics<parallel>, #tpu.dimension_semantics<parallel>], iteration_bounds = array<i64: 2, 1>, scalar_prefetch = 0 : i64, scratch_operands = 0 : i64, tpu.core_type = #tpu.core_type<tc>, window_params = [{transform_indices = @transform_0, window_bounds = array<i64: 1, 4, 512>}, {pipeline_mode = #tpu.pipeline_mode<synchronous>, transform_indices = @transform_1, window_bounds = array<i64: 16, 4>}, {pipeline_mode = #tpu.pipeline_mode<synchronous>, transform_indices = @transform_2, window_bounds = array<i64: 4, 16>}, {transform_indices = @transform_3, window_bounds = array<i64: 1, 4, 512>}]} {
    %c0 = arith.constant 0 : index
    %c0_0 = arith.constant 0 : index
    %c0_1 = arith.constant 0 : index
    %0 = vector.load %arg2[%c0, %c0_0, %c0_1] : memref<1x4x512xf32, #tpu.memory_space<vmem>>, vector<1x4x512xf32>
    %1 = vector.shape_cast %0 : vector<1x4x512xf32> to vector<4x512xf32>
    %2 = arith.mulf %1, %1 : vector<4x512xf32>
    %cst = arith.constant dense<0.000000e+00> : vector<512xf32>
    %3 = vector.multi_reduction <add>, %2, %cst [0] : vector<4x512xf32> to vector<512xf32>
    %4 = vector.shape_cast %3 : vector<512xf32> to vector<1x512xf32>
    %cst_2 = arith.constant 9.99999993E-9 : f32
    %5 = vector.broadcast %cst_2 : f32 to vector<1x512xf32>
    %6 = arith.maximumf %4, %5 : vector<1x512xf32>
    %7 = math.rsqrt %6 : vector<1x512xf32>
    %8 = vector.broadcast %7 : vector<1x512xf32> to vector<4x512xf32>
    %9 = arith.mulf %1, %8 : vector<4x512xf32>
    %c0_3 = arith.constant 0 : index
    %c0_4 = arith.constant 0 : index
    %10 = vector.load %arg3[%c0_3, %c0_4] : memref<16x4xbf16, #tpu.memory_space<vmem>>, vector<16x4xbf16>
    %11 = arith.truncf %9 : vector<4x512xf32> to vector<4x512xbf16>
    %cst_5 = arith.constant dense<0.000000e+00> : vector<16x512xf32>
    %12 = tpu.matmul %10, %11, %cst_5 {dimension_numbers = #tpu.dot_dimension_numbers<[1], [0], [0], [1], [0, 0, 1, 1], [], []>} : vector<16x4xbf16>, vector<4x512xbf16>, vector<16x512xf32> -> vector<16x512xf32>
    %13 = arith.negf %12 : vector<16x512xf32>
    %14 = math.exp %13 : vector<16x512xf32>
    %cst_6 = arith.constant 1.000000e+00 : f32
    %15 = vector.broadcast %cst_6 : f32 to vector<16x512xf32>
    %16 = arith.addf %15, %14 : vector<16x512xf32>
    %17 = arith.divf %15, %16 : vector<16x512xf32>
    %18 = arith.mulf %12, %17 : vector<16x512xf32>
    %c0_7 = arith.constant 0 : index
    %c0_8 = arith.constant 0 : index
    %19 = vector.load %arg4[%c0_7, %c0_8] : memref<4x16xbf16, #tpu.memory_space<vmem>>, vector<4x16xbf16>
    %20 = arith.truncf %18 : vector<16x512xf32> to vector<16x512xbf16>
    %cst_9 = arith.constant dense<0.000000e+00> : vector<4x512xf32>
    %21 = tpu.matmul %19, %20, %cst_9 {dimension_numbers = #tpu.dot_dimension_numbers<[1], [0], [0], [1], [0, 0, 1, 1], [], []>} : vector<4x16xbf16>, vector<16x512xbf16>, vector<4x512xf32> -> vector<4x512xf32>
    %cst_10 = arith.constant 0.393919289 : f32
    %22 = vector.broadcast %cst_10 : f32 to vector<4x512xf32>
    %23 = arith.mulf %1, %22 : vector<4x512xf32>
    %24 = arith.addf %21, %23 : vector<4x512xf32>
    %c0_11 = arith.constant 0 : index
    %c0_12 = arith.constant 0 : index
    %c0_13 = arith.constant 0 : index
    %25 = vector.load %arg5[%c0_11, %c0_12, %c0_13] : memref<1x4x512xf32, #tpu.memory_space<vmem>>, vector<1x4x512xf32>
    %26 = vector.shape_cast %25 : vector<1x4x512xf32> to vector<4x512xf32>
    %27 = vector.shape_cast %24 : vector<4x512xf32> to vector<1x4x512xf32>
    tpu.vector_store %arg5[%c0_11, %c0_12, %c0_13], %27 {strides = array<i32>} : memref<1x4x512xf32, #tpu.memory_space<vmem>>, vector<1x4x512xf32>,
    return
  }
  func.func @transform_0(%arg0: i32, %arg1: i32) -> (i32, i32, i32) {
    %c0_i32 = arith.constant 0 : i32
    %c0_i32_0 = arith.constant 0 : i32
    return %arg0, %c0_i32, %arg1 : i32, i32, i32
  }
  func.func @transform_1(%arg0: i32, %arg1: i32) -> (i32, i32) {
    %c0_i32 = arith.constant 0 : i32
    %c0_i32_0 = arith.constant 0 : i32
    %c0_i32_1 = arith.constant 0 : i32
    return %c0_i32, %c0_i32_0 : i32, i32
  }
  func.func @transform_2(%arg0: i32, %arg1: i32) -> (i32, i32) {
    %c0_i32 = arith.constant 0 : i32
    %c0_i32_0 = arith.constant 0 : i32
    %c0_i32_1 = arith.constant 0 : i32
    return %c0_i32, %c0_i32_0 : i32, i32
  }
  func.func @transform_3(%arg0: i32, %arg1: i32) -> (i32, i32, i32) {
    %c0_i32 = arith.constant 0 : i32
    %c0_i32_0 = arith.constant 0 : i32
    return %arg0, %c0_i32, %arg1 : i32, i32, i32
  }
}

</mosaic_0001>

<llo_original>
// kernel: tpu_custom_call.1
$region0: #{tpu_custom_call.1}
  #allocation0 [shape = 'u32[]', space=smem, size = 0x4, offset = 0x4, fixed_abs, tag = 'smem constant byte address 0x4 - core index']
  #allocation1 [shape = 'u32[144,128]{1,0:T(1,128)}', space=vmem, size = 0x12000, scoped, tag = 'internal scratch']
  %s0 = inlined_call_operand.hbm [shape: f32[2,4,512], index: 0, kind: input, shape index: {}]
  %s1 = inlined_call_operand.vmem [shape: bf16[16,4], index: 1, kind: input, shape index: {}]
  %s2 = inlined_call_operand.vmem [shape: bf16[4,16], index: 2, kind: input, shape index: {}]
  %s3 = inlined_call_operand.hbm [shape: f32[2,4,512], index: 3, kind: output, shape index: {}]
  %s4 = sld [smem:[#allocation0]]
  $region49: #{tpu_custom_call.1} parent=0
    _
  %s6 = ssub.s32 1, %s4
  %s7 = scalar_select 0, %s6, %s4
  $region1: #{tpu_custom_call.1} parent=0
    #allocation2 [shape = 'u8[16384]{0}', space=vmem, size = 0x4000, scoped, tag = 'input window, operand 0']
    #allocation3 [shape = 's32[2]{0}', space=sflag, size = 0x8, scoped, tag = 'scoped memory for tpu_custom_call.1']
    #allocation4 [shape = 's32[2]{0}', space=sflag, size = 0x8, scoped, tag = 'scoped memory for tpu_custom_call.1']
    #allocation5 [shape = 'u8[16384]{0}', space=vmem, size = 0x4000, scoped, tag = 'output window, operand 0']
    %8 = vsyncpa [#allocation3], 0
    %s9 = scalar_lea.sflag [#allocation3], 1
    %10 = vsyncpa %s9, 0
    %11 = vsyncpa [#allocation4], 0
    %s12 = scalar_lea.sflag [#allocation4], 1
    %13 = vsyncpa %s12, 0
    loop: start=0, step=1, limit=4
    $region2: #{tpu_custom_call.1} parent=1 // loop_pre_header
      _
    $region3: #{tpu_custom_call.1} parent=1 // loop_header
      %s15 = sphi 0, %s19
      %p16 = scmp.ge.s32.totalorder %s15, 4
      %s22 = sphi 0, %s34
      %s23 = sphi 0, %s30
      %s24 = sphi 0, %s22
      %s25 = sphi 0, %s23
      %s26 = sphi 0, %s24
      %s27 = sphi 0, %s25
      %s39 = sphi 0, %s41
      %s42 = sphi 0, %s39
      %s43 = sphi 0, %s42
      %s59 = sphi 0, %s43
      %s63 = sphi 0, %s63
      %s65 = sphi 0, %s63
      %s66 = sphi 0, %s65
      %s80 = sphi 0, %s66
      %s84 = sphi 0, %s84
      %s86 = sphi 0, %s84
      %s87 = sphi 0, %s86
      %s101 = sphi 0, %s87
      %s109 = sphi 0, %s111
      %s112 = sphi 0, %s109
      %s113 = sphi 0, %s112
      %s129 = sphi 0, %s113
    $region4: #{tpu_custom_call.1} parent=1 // loop_header_branch
      %18 = sbr.rel (%p16) target = $region8
    $region5: #{tpu_custom_call.1} parent=1 // loop_body
      %s20 = ssub.s32 %s15, 1
      %s21 = ssub.s32 %s15, 2
      %s28 = sadd.s32 1, %s23
      %p29 = scmp.ge.s32.totalorder %s28, 1
      %s30 = scalar_select %p29, 0, %s28
      %s31 = sadd.s32 1, %s22
      %s32 = scalar_select %p29, %s31, %s22
      %p33 = scmp.ge.s32.totalorder %s32, 2
      %s34 = scalar_select %p33, 0, %s32
      %s35 = ssub.s32 %s22, %s34
      %s36 = ssub.s32 %s23, %s30
      %s37 = sor.u32 %s35, %s36
      %p38 = scmp.eq.s32.totalorder %s37, 0
      %s40 = sadd.s32 %s39, 1
      %s41 = scalar_select %p38, %s39, %s40
      %p44 = pneg %p38
      %p45 = scmp.eq.s32.totalorder %s15, 1
      %p46 = por %p44, %p45
      %p47 = scmp.ne.s32.totalorder %s39, %s42
      %p48 = scmp.eq.s32.totalorder %s15, 0
      %p49 = por %p47, %p48
      %p50 = scmp.ne.s32.totalorder %s39, %s42
      %p51 = scmp.eq.s32.totalorder %s20, 1
      %p52 = por %p50, %p51
      %p53 = scmp.ne.s32.totalorder %s42, %s43
      %p54 = scmp.eq.s32.totalorder %s20, 0
      %p55 = por %p53, %p54
      %p56 = scmp.ne.s32.totalorder %s42, %s43
      %p57 = scmp.eq.s32.totalorder %s21, 1
      %p58 = por %p56, %p57
      %p60 = scmp.ne.s32.totalorder %s43, %s59
      %p61 = scmp.eq.s32.totalorder %s21, 0
      %p62 = por %p60, %p61
      %s64 = sadd.s32 %s63, 1
      %p67 = scmp.eq.s32.totalorder %s15, 1
      %p68 = scmp.ne.s32.totalorder %s63, %s65
      %p69 = scmp.eq.s32.totalorder %s15, 0
      %p70 = por %p68, %p69
      %p71 = scmp.ne.s32.totalorder %s63, %s65
      %p72 = scmp.eq.s32.totalorder %s20, 1
      %p73 = por %p71, %p72
      %p74 = scmp.ne.s32.totalorder %s65, %s66
      %p75 = scmp.eq.s32.totalorder %s20, 0
      %p76 = por %p74, %p75
      %p77 = scmp.ne.s32.totalorder %s65, %s66
      %p78 = scmp.eq.s32.totalorder %s21, 1
      %p79 = por %p77, %p78
      %p81 = scmp.ne.s32.totalorder %s66, %s80
      %p82 = scmp.eq.s32.totalorder %s21, 0
      %p83 = por %p81, %p82
      %s85 = sadd.s32 %s84, 1
      %p88 = scmp.eq.s32.totalorder %s15, 1
      %p89 = scmp.ne.s32.totalorder %s84, %s86
      %p90 = scmp.eq.s32.totalorder %s15, 0
      %p91 = por %p89, %p90
      %p92 = scmp.ne.s32.totalorder %s84, %s86
      %p93 = scmp.eq.s32.totalorder %s20, 1
      %p94 = por %p92, %p93
      %p95 = scmp.ne.s32.totalorder %s86, %s87
      %p96 = scmp.eq.s32.totalorder %s20, 0
      %p97 = por %p95, %p96
      %p98 = scmp.ne.s32.totalorder %s86, %s87
      %p99 = scmp.eq.s32.totalorder %s21, 1
      %p100 = por %p98, %p99
      %p102 = scmp.ne.s32.totalorder %s87, %s101
      %p103 = scmp.eq.s32.totalorder %s21, 0
      %p104 = por %p102, %p103
      %s105 = ssub.s32 %s22, %s34
      %s106 = ssub.s32 %s23, %s30
      %s107 = sor.u32 %s105, %s106
      %p108 = scmp.eq.s32.totalorder %s107, 0
      %s110 = sadd.s32 %s109, 1
      %s111 = scalar_select %p108, %s109, %s110
      %p114 = pneg %p108
      %p115 = scmp.eq.s32.totalorder %s15, 1
      %p116 = por %p114, %p115
      %p117 = scmp.ne.s32.totalorder %s109, %s112
      %p118 = scmp.eq.s32.totalorder %s15, 0
      %p119 = por %p117, %p118
      %p120 = scmp.ne.s32.totalorder %s109, %s112
      %p121 = scmp.eq.s32.totalorder %s20, 1
      %p122 = por %p120, %p121
      %p123 = scmp.ne.s32.totalorder %s112, %s113
      %p124 = scmp.eq.s32.totalorder %s20, 0
      %p125 = por %p123, %p124
      %p126 = scmp.ne.s32.totalorder %s112, %s113
      %p127 = scmp.eq.s32.totalorder %s21, 1
      %p128 = por %p126, %p127
      %p130 = scmp.ne.s32.totalorder %s113, %s129
      %p131 = scmp.eq.s32.totalorder %s21, 0
      %p132 = por %p130, %p131
      %p133 = scmp.le.s32.totalorder 1, %s15
      %p134 = scmp.lt.s32.totalorder %s15, 3
      %p135 = pnand %p133, %p134
      %p136 = pneg %p135
      // Predicated region
      $region9: #{tpu_custom_call.1} parent=5 // pred_check
        _
      $region10: #{tpu_custom_call.1} parent=5 // pred_check_branch
        %138 = sbr.rel (%p135) target = $region12
      $region11: #{tpu_custom_call.1} parent=5 // pred_region
        %s139 = ssub.s32 %s15, 1
        // Predicated region
        $region13: #{tpu_custom_call.1} parent=11 // pred_check
          %p140 = pneg %p76
        $region14: #{tpu_custom_call.1} parent=11 // pred_check_branch
          %142 = sbr.rel (%p140) target = $region16
        $region15: #{tpu_custom_call.1} parent=11 // pred_region
          _
        $region16: #{tpu_custom_call.1} parent=11 // pred_fallthru
          _
        // Predicated region
        $region17: #{tpu_custom_call.1} parent=11 // pred_check
          %p143 = pneg %p97
        $region18: #{tpu_custom_call.1} parent=11 // pred_check_branch
          %145 = sbr.rel (%p143) target = $region20
        $region19: #{tpu_custom_call.1} parent=11 // pred_region
          _
        $region20: #{tpu_custom_call.1} parent=11 // pred_fallthru
          _
      $region12: #{tpu_custom_call.1} parent=5 // pred_fallthru
        _
      %p146 = scmp.lt.s32.totalorder %s15, 2
      // Predicated region
      $region21: #{tpu_custom_call.1} parent=5 // pred_check
        %p147 = pneg %p146
      $region22: #{tpu_custom_call.1} parent=5 // pred_check_branch
        %149 = sbr.rel (%p147) target = $region24
      $region23: #{tpu_custom_call.1} parent=5 // pred_region
        // Predicated region
        $region25: #{tpu_custom_call.1} parent=23 // pred_check
          %p150 = pneg %p49
        $region26: #{tpu_custom_call.1} parent=23 // pred_check_branch
          %152 = sbr.rel (%p150) target = $region28
        $region27: #{tpu_custom_call.1} parent=23 // pred_region
          %s153 = sand.u32 %s39, 1
          %s154 = scalar_lea.sflag [#allocation3], %s153
          %s155 = sand.u32 %s39, 1
          %s156 = smul.addr %s155, 16
          %s157 = scalar_lea.vmem [#allocation2], %s156
          %s158 = smul.u32 4, %s23
          %s160 = ssub.s32 256, 256
          %161 = vsyncadd %s154, %s160
          %s162 = smul.addr %s22, 4
          %s163 = sadd.s32 %s158, %s162
          %s164 = smul.addr %s163, 64
          %s165 = scalar_lea.hbm %s0, %s164
          %s167 = sshll.u32 %s157, 4
          %s168 = int_to_ptr.vmem [resolvable:$true] %s167
          %170 = dma.hbm_to_vmem [thread:$0]  %s165, 256, %s168, %s154
        $region28: #{tpu_custom_call.1} parent=23 // pred_fallthru
          _
      $region24: #{tpu_custom_call.1} parent=5 // pred_fallthru
        _
      %p171 = scmp.le.s32.totalorder 1, %s15
      %p172 = scmp.lt.s32.totalorder %s15, 3
      %p173 = pnand %p171, %p172
      %p174 = pneg %p173
      // Predicated region
      $region29: #{tpu_custom_call.1} parent=5 // pred_check
        _
      $region30: #{tpu_custom_call.1} parent=5 // pred_check_branch
        %176 = sbr.rel (%p173) target = $region32
      $region31: #{tpu_custom_call.1} parent=5 // pred_region
        %s177 = ssub.s32 %s15, 1
        %s178 = sand.u32 %s42, 1
        %s179 = scalar_lea.sflag [#allocation3], %s178
        %s180 = sand.u32 %s42, 1
        %s181 = smul.addr %s180, 16
        %s182 = scalar_lea.vmem [#allocation2], %s181
        // Predicated region
        $region33: #{tpu_custom_call.1} parent=31 // pred_check
          %p183 = pneg %p55
        $region34: #{tpu_custom_call.1} parent=31 // pred_check_branch
          %185 = sbr.rel (%p183) target = $region36
        $region35: #{tpu_custom_call.1} parent=31 // pred_region
          %186 = dma.done %s179, 256
        $region36: #{tpu_custom_call.1} parent=31 // pred_fallthru
          _
        %s187 = sand.u32 %s42, 1
        %s188 = scalar_lea.sflag [#allocation3], %s187
        %s189 = sand.u32 %s42, 1
        %s190 = smul.addr %s189, 16
        %s191 = scalar_lea.vmem [#allocation2], %s190
        %p192 = pneg %p55
        %p193 = pneg %p52
        %p194 = pneg %p76
        %p195 = pneg %p73
        %p196 = pneg %p97
        %p197 = pneg %p94
        %p198 = pneg %p125
        %p199 = pneg %p122
        %s200 = sand.u32 %s112, 1
        %s201 = scalar_lea.sflag [#allocation4], %s200
        %s202 = sand.u32 %s112, 1
        %s203 = smul.addr %s202, 16
        %s204 = scalar_lea.vmem [#allocation5], %s203
        %s205 = smul.u32 4, %s25
        %s206 = smul.u32 4, %s25
        %v208 = vld [vmem:[%s182] sm:$0xff]
        %v209 = vld [vmem:[%s182 + $0x8] sm:$0xff]
        %v210 = vmul.f32 %v208, %v208
        %v211 = vmul.f32 %v209, %v209
        %v214 = vcombine.high %v210, %v210
        %v215 = vcombine.high %v211, %v211
        %vm218 = vcmask 1043456
        %v219 = vsel %vm218, %v210, 0.0
        %v220 = vrot.slane %v219, 4
        %v221 = vadd.f32 %v219, %v220
        %v222 = vrot.slane %v221, 2
        %v223 = vadd.f32 %v221, %v222
        %v224 = vrot.slane %v223, 1
        %v225 = vadd.f32 %v223, %v224
        %v226 = vsel %vm218, %v214, 0.0
        %v227 = vrot.slane %v226, 4
        %v228 = vadd.f32 %v226, %v227
        %v229 = vrot.slane %v228, 2
        %v230 = vadd.f32 %v228, %v229
        %v231 = vrot.slane %v230, 1
        %v232 = vadd.f32 %v230, %v231
        %v233 = vsel %vm218, %v211, 0.0
        %v234 = vrot.slane %v233, 4
        %v235 = vadd.f32 %v233, %v234
        %v236 = vrot.slane %v235, 2
        %v237 = vadd.f32 %v235, %v236
        %v238 = vrot.slane %v237, 1
        %v239 = vadd.f32 %v237, %v238
        %v240 = vsel %vm218, %v215, 0.0
        %v241 = vrot.slane %v240, 4
        %v242 = vadd.f32 %v240, %v241
        %v243 = vrot.slane %v242, 2
        %v244 = vadd.f32 %v242, %v243
        %v245 = vrot.slane %v244, 1
        %v246 = vadd.f32 %v244, %v245
        %v247 = vmax.f32 %v225, 1e-08
        %v248 = vmax.f32 %v232, 1e-08
        %v249 = vmax.f32 %v239, 1e-08
        %v250 = vmax.f32 %v246, 1e-08
        %v251 = vrsqrt.pop %v247
        %v252 = vrsqrt.pop %v248
        %v253 = vrsqrt.pop %v249
        %v254 = vrsqrt.pop %v250
        %v259 = vcombine.low %v251, %v252
        %v260 = vcombine.low %v253, %v254
        %v263 = vmul.f32 %v208, %v259
        %v264 = vmul.f32 %v209, %v260
        %v265 = vld [vmem:[%s1] sm:$0xf]
        %v266 = vld [vmem:[%s1 + $0x4] sm:$0xf]
        %v269 = vcombine.high %v263, %v263
        %v270 = vcombine.high %v264, %v264
        %v273 = vpack.c.bf16 %v263, %v263
        %v274 = vpack.c.bf16 %v269, %v269
        %v275 = vpack.c.bf16 %v264, %v264
        %v276 = vpack.c.bf16 %v270, %v270
        %v279 = vunpack.c.l.b16 %v265
        %v280 = vunpack.c.l.b16 %v266
        %v281 = vpack.c.b16 %v280, %v279
        %vm282 = vcmask 31744
        %v284 = vsel %vm282, %v281, 0
        %vm286 = vcmask 1041408
        %v288 = vsel %vm286, %v273, 0
        %v291 = vsel %vm286, %v274, 0
        %v294 = vsel %vm286, %v275, 0
        %v297 = vsel %vm286, %v276, 0
        %299 = vmatprep.subr.bf16.mxu0 %v291
        %300 = vmatpush1.bf16.msra.mxu0 %v288
        %301 = vmatprep.subr.bf16.mxu0 0
        %302 = vmatpush1.bf16.msra.mxu0 0
        %303 = vmatprep.subr.bf16.mxu0 0
        %304 = vmatpush1.bf16.msra.mxu0 0
        %305 = vmatprep.subr.bf16.mxu0 0
        %306 = vmatpush1.bf16.msra.mxu0 0
        %307 = vmatprep.subr.bf16.mxu0 0
        %308 = vmatpush1.bf16.msra.mxu0 0
        %309 = vmatprep.subr.bf16.mxu0 0
        %310 = vmatpush1.bf16.msra.mxu0 0
        %311 = vmatprep.subr.bf16.mxu0 0
        %312 = vmatpush1.bf16.msra.mxu0 0
        %313 = vmatprep.subr.bf16.mxu0 0
        %314 = vmatpush1.bf16.msra.mxu0 0
        %315 = vmatprep.subr.bf16.mxu0 0
        %316 = vmatpush1.bf16.msra.mxu0 0
        %317 = vmatprep.subr.bf16.mxu0 0
        %318 = vmatpush1.bf16.msra.mxu0 0
        %319 = vmatprep.subr.bf16.mxu0 0
        %320 = vmatpush1.bf16.msra.mxu0 0
        %321 = vmatprep.subr.bf16.mxu0 0
        %322 = vmatpush1.bf16.msra.mxu0 0
        %323 = vmatprep.subr.bf16.mxu0 0
        %324 = vmatpush1.bf16.msra.mxu0 0
        %325 = vmatprep.subr.bf16.mxu0 0
        %326 = vmatpush1.bf16.msra.mxu0 0
        %327 = vmatprep.subr.bf16.mxu0 0
        %328 = vmatpush1.bf16.msra.mxu0 0
        %329 = vmatprep.subr.bf16.mxu0 0
        %330 = vmatpush1.bf16.msra.mxu0 0
        %331 = vmatprep.mubr.bf16.mxu0 0
        %332 = vmatmul.mubr.bf16.gmra.mrb[0].mxu0 %v284
        %v333 = vpop.f32.mrb[0].mxu0
        %v334 = vadd.f32 0.0, %v333
        %v335 = vpop.f32.mrb[0].mxu0
        %v336 = vadd.f32 0.0, %v335
        %v337 = vpop.f32.mrb[0].mxu0
        %v338 = vadd.f32 0.0, %v337
        %v339 = vpop.f32.mrb[0].mxu0
        %v340 = vadd.f32 0.0, %v339
        %341 = vdwg.mxu0
        %342 = vmatprep.subr.bf16.mxu0 %v297
        %343 = vmatpush1.bf16.msra.mxu0 %v294
        %344 = vmatprep.subr.bf16.mxu0 0
        %345 = vmatpush1.bf16.msra.mxu0 0
        %346 = vmatprep.subr.bf16.mxu0 0
        %347 = vmatpush1.bf16.msra.mxu0 0
        %348 = vmatprep.subr.bf16.mxu0 0
        %349 = vmatpush1.bf16.msra.mxu0 0
        %350 = vmatprep.subr.bf16.mxu0 0
        %351 = vmatpush1.bf16.msra.mxu0 0
        %352 = vmatprep.subr.bf16.mxu0 0
        %353 = vmatpush1.bf16.msra.mxu0 0
        %354 = vmatprep.subr.bf16.mxu0 0
        %355 = vmatpush1.bf16.msra.mxu0 0
        %356 = vmatprep.subr.bf16.mxu0 0
        %357 = vmatpush1.bf16.msra.mxu0 0
        %358 = vmatprep.subr.bf16.mxu0 0
        %359 = vmatpush1.bf16.msra.mxu0 0
        %360 = vmatprep.subr.bf16.mxu0 0
        %361 = vmatpush1.bf16.msra.mxu0 0
        %362 = vmatprep.subr.bf16.mxu0 0
        %363 = vmatpush1.bf16.msra.mxu0 0
        %364 = vmatprep.subr.bf16.mxu0 0
        %365 = vmatpush1.bf16.msra.mxu0 0
        %366 = vmatprep.subr.bf16.mxu0 0
        %367 = vmatpush1.bf16.msra.mxu0 0
        %368 = vmatprep.subr.bf16.mxu0 0
        %369 = vmatpush1.bf16.msra.mxu0 0
        %370 = vmatprep.subr.bf16.mxu0 0
        %371 = vmatpush1.bf16.msra.mxu0 0
        %372 = vmatprep.subr.bf16.mxu0 0
        %373 = vmatpush1.bf16.msra.mxu0 0
        %374 = vmatprep.mubr.bf16.mxu0 0
        %375 = vmatmul.mubr.bf16.gmra.mrb[0].mxu0 %v284
        %v376 = vpop.f32.mrb[0].mxu0
        %v377 = vadd.f32 0.0, %v376
        %v378 = vpop.f32.mrb[0].mxu0
        %v379 = vadd.f32 0.0, %v378
        %v380 = vpop.f32.mrb[0].mxu0
        %v381 = vadd.f32 0.0, %v380
        %v382 = vpop.f32.mrb[0].mxu0
        %v383 = vadd.f32 0.0, %v382
        %384 = vdwg.mxu0
        %v385 = vxor.u32 %v334, 2147483648
        %v386 = vxor.u32 %v336, 2147483648
        %v387 = vxor.u32 %v377, 2147483648
        %v388 = vxor.u32 %v379, 2147483648
        %v389 = vxor.u32 %v338, 2147483648
        %v390 = vxor.u32 %v340, 2147483648
        %v391 = vxor.u32 %v381, 2147483648
        %v392 = vxor.u32 %v383, 2147483648
        %v393 = vmul.f32 %v385, 1.442695
        %v394 = vpow.pop %v393
        %v395 = vmul.f32 %v386, 1.442695
        %v396 = vpow.pop %v395
        %v397 = vmul.f32 %v387, 1.442695
        %v398 = vpow.pop %v397
        %v399 = vmul.f32 %v388, 1.442695
        %v400 = vpow.pop %v399
        %v401 = vmul.f32 %v389, 1.442695
        %v402 = vpow.pop %v401
        %v403 = vmul.f32 %v390, 1.442695
        %v404 = vpow.pop %v403
        %v405 = vmul.f32 %v391, 1.442695
        %v406 = vpow.pop %v405
        %v407 = vmul.f32 %v392, 1.442695
        %v408 = vpow.pop %v407
        %v409 = vadd.f32 %v394, 1.0
        %v410 = vadd.f32 %v396, 1.0
        %v411 = vadd.f32 %v398, 1.0
        %v412 = vadd.f32 %v400, 1.0
        %v413 = vadd.f32 %v402, 1.0
        %v414 = vadd.f32 %v404, 1.0
        %v415 = vadd.f32 %v406, 1.0
        %v416 = vadd.f32 %v408, 1.0
        %v417 = vrcp.pop %v409
        %v418 = vmul.f32 1.0, %v417
        %v419 = vrcp.pop %v410
        %v420 = vmul.f32 1.0, %v419
        %v421 = vrcp.pop %v411
        %v422 = vmul.f32 1.0, %v421
        %v423 = vrcp.pop %v412
        %v424 = vmul.f32 1.0, %v423
        %v425 = vrcp.pop %v413
        %v426 = vmul.f32 1.0, %v425
        %v427 = vrcp.pop %v414
        %v428 = vmul.f32 1.0, %v427
        %v429 = vrcp.pop %v415
        %v430 = vmul.f32 1.0, %v429
        %v431 = vrcp.pop %v416
        %v432 = vmul.f32 1.0, %v431
        %v433 = vmul.f32 %v334, %v418
        %v434 = vmul.f32 %v336, %v420
        %v435 = vmul.f32 %v377, %v422
        %v436 = vmul.f32 %v379, %v424
        %v437 = vmul.f32 %v338, %v426
        %v438 = vmul.f32 %v340, %v428
        %v439 = vmul.f32 %v381, %v430
        %v440 = vmul.f32 %v383, %v432
        %v441 = vld [vmem:[%s2] sm:$0x3]
        %v442 = vpack.c.bf16 %v437, %v433
        %v443 = vpack.c.bf16 %v438, %v434
        %v444 = vpack.c.bf16 %v439, %v435
        %v445 = vpack.c.bf16 %v440, %v436
        %v446 = vmul.f32 %v208, 0.3939193
        %v447 = vmul.f32 %v209, 0.3939193
        %v450 = vcombine.high %v446, %v446
        %v451 = vcombine.high %v447, %v447
        %vm454 = vcmask 130048
        %v456 = vsel %vm454, %v441, 0
        %458 = vmatprep.subr.bf16.mxu0 %v443
        %459 = vmatpush1.bf16.msra.mxu0 %v442
        %460 = vmatprep.subr.bf16.mxu0 0
        %461 = vmatpush1.bf16.msra.mxu0 0
        %462 = vmatprep.subr.bf16.mxu0 0
        %463 = vmatpush1.bf16.msra.mxu0 0
        %464 = vmatprep.subr.bf16.mxu0 0
        %465 = vmatpush1.bf16.msra.mxu0 0
        %466 = vmatprep.subr.bf16.mxu0 0
        %467 = vmatpush1.bf16.msra.mxu0 0
        %468 = vmatprep.subr.bf16.mxu0 0
        %469 = vmatpush1.bf16.msra.mxu0 0
        %470 = vmatprep.subr.bf16.mxu0 0
        %471 = vmatpush1.bf16.msra.mxu0 0
        %472 = vmatprep.subr.bf16.mxu0 0
        %473 = vmatpush1.bf16.msra.mxu0 0
        %474 = vmatprep.subr.bf16.mxu0 0
        %475 = vmatpush1.bf16.msra.mxu0 0
        %476 = vmatprep.subr.bf16.mxu0 0
        %477 = vmatpush1.bf16.msra.mxu0 0
        %478 = vmatprep.subr.bf16.mxu0 0
        %479 = vmatpush1.bf16.msra.mxu0 0
        %480 = vmatprep.subr.bf16.mxu0 0
        %481 = vmatpush1.bf16.msra.mxu0 0
        %482 = vmatprep.subr.bf16.mxu0 0
        %483 = vmatpush1.bf16.msra.mxu0 0
        %484 = vmatprep.subr.bf16.mxu0 0
        %485 = vmatpush1.bf16.msra.mxu0 0
        %486 = vmatprep.subr.bf16.mxu0 0
        %487 = vmatpush1.bf16.msra.mxu0 0
        %488 = vmatprep.subr.bf16.mxu0 0
        %489 = vmatpush1.bf16.msra.mxu0 0
        %490 = vmatprep.mubr.bf16.mxu0 0
        %491 = vmatmul.mubr.bf16.gmra.mrb[0].mxu0 %v456
        %v492 = vpop.f32.mrb[0].mxu0
        %v493 = vadd.f32 %v446, %v492
        %v494 = vpop.f32.mrb[0].mxu0
        %v495 = vadd.f32 %v450, %v494
        %v496 = vpop.f32.mrb[0].mxu0
        %v497 = vpop.f32.mrb[0].mxu0
        %498 = vdwg.mxu0
        %499 = vmatprep.subr.bf16.mxu0 %v445
        %500 = vmatpush1.bf16.msra.mxu0 %v444
        %501 = vmatprep.subr.bf16.mxu0 0
        %502 = vmatpush1.bf16.msra.mxu0 0
        %503 = vmatprep.subr.bf16.mxu0 0
        %504 = vmatpush1.bf16.msra.mxu0 0
        %505 = vmatprep.subr.bf16.mxu0 0
        %506 = vmatpush1.bf16.msra.mxu0 0
        %507 = vmatprep.subr.bf16.mxu0 0
        %508 = vmatpush1.bf16.msra.mxu0 0
        %509 = vmatprep.subr.bf16.mxu0 0
        %510 = vmatpush1.bf16.msra.mxu0 0
        %511 = vmatprep.subr.bf16.mxu0 0
        %512 = vmatpush1.bf16.msra.mxu0 0
        %513 = vmatprep.subr.bf16.mxu0 0
        %514 = vmatpush1.bf16.msra.mxu0 0
        %515 = vmatprep.subr.bf16.mxu0 0
        %516 = vmatpush1.bf16.msra.mxu0 0
        %517 = vmatprep.subr.bf16.mxu0 0
        %518 = vmatpush1.bf16.msra.mxu0 0
        %519 = vmatprep.subr.bf16.mxu0 0
        %520 = vmatpush1.bf16.msra.mxu0 0
        %521 = vmatprep.subr.bf16.mxu0 0
        %522 = vmatpush1.bf16.msra.mxu0 0
        %523 = vmatprep.subr.bf16.mxu0 0
        %524 = vmatpush1.bf16.msra.mxu0 0
        %525 = vmatprep.subr.bf16.mxu0 0
        %526 = vmatpush1.bf16.msra.mxu0 0
        %527 = vmatprep.subr.bf16.mxu0 0
        %528 = vmatpush1.bf16.msra.mxu0 0
        %529 = vmatprep.subr.bf16.mxu0 0
        %530 = vmatpush1.bf16.msra.mxu0 0
        %531 = vmatprep.mubr.bf16.mxu0 0
        %532 = vmatmul.mubr.bf16.gmra.mrb[0].mxu0 %v456
        %v533 = vpop.f32.mrb[0].mxu0
        %v534 = vadd.f32 %v447, %v533
        %v535 = vpop.f32.mrb[0].mxu0
        %v536 = vadd.f32 %v451, %v535
        %v537 = vpop.f32.mrb[0].mxu0
        %v538 = vpop.f32.mrb[0].mxu0
        %539 = vdwg.mxu0
        %v544 = vcombine.low %v493, %v495
        %v545 = vcombine.low %v534, %v536
        %548 = vst [vmem:[%s204] sm:$0xff] %v544
        %549 = vst [vmem:[%s204 + $0x8] sm:$0xff] %v545
        %s550 = sand.u32 %s112, 1
        %s551 = scalar_lea.sflag [#allocation4], %s550
        %s552 = sand.u32 %s112, 1
        %s553 = smul.addr %s552, 16
        %s554 = scalar_lea.vmem [#allocation5], %s553
        // Predicated region
        $region37: #{tpu_custom_call.1} parent=31 // pred_check
          %p555 = pneg %p122
        $region38: #{tpu_custom_call.1} parent=31 // pred_check_branch
          %557 = sbr.rel (%p555) target = $region40
        $region39: #{tpu_custom_call.1} parent=31 // pred_region
          %s558 = smul.u32 4, %s25
          %s560 = ssub.s32 256, 256
          %561 = vsyncadd %s551, %s560
          %s562 = smul.addr %s24, 4
          %s563 = sadd.s32 %s558, %s562
          %s564 = smul.addr %s563, 64
          %s565 = scalar_lea.hbm %s3, %s564
          %s567 = sshll.u32 %s554, 4
          %s568 = int_to_ptr.vmem [resolvable:$true] %s567
          %570 = dma.vmem_to_hbm [thread:$0]  %s568, 256, %s565, %s551
        $region40: #{tpu_custom_call.1} parent=31 // pred_fallthru
          _
      $region32: #{tpu_custom_call.1} parent=5 // pred_fallthru
        _
      %p571 = scmp.le.s32.totalorder 2, %s15
      // Predicated region
      $region41: #{tpu_custom_call.1} parent=5 // pred_check
        %p572 = pneg %p571
      $region42: #{tpu_custom_call.1} parent=5 // pred_check_branch
        %574 = sbr.rel (%p572) target = $region44
      $region43: #{tpu_custom_call.1} parent=5 // pred_region
        %s575 = ssub.s32 %s15, 2
        // Predicated region
        $region45: #{tpu_custom_call.1} parent=43 // pred_check
          %p576 = pneg %p128
        $region46: #{tpu_custom_call.1} parent=43 // pred_check_branch
          %578 = sbr.rel (%p576) target = $region48
        $region47: #{tpu_custom_call.1} parent=43 // pred_region
          %s579 = sand.u32 %s113, 1
          %s580 = scalar_lea.sflag [#allocation4], %s579
          %s581 = sand.u32 %s113, 1
          %s582 = smul.addr %s581, 16
          %s583 = scalar_lea.vmem [#allocation5], %s582
          %584 = dma.done %s580, 256
        $region48: #{tpu_custom_call.1} parent=43 // pred_fallthru
          _
      $region44: #{tpu_custom_call.1} parent=5 // pred_fallthru
        _
    $region6: #{tpu_custom_call.1} parent=1 // loop_footer
      %s19 = sadd.s32 1, %s15
    $region7: #{tpu_custom_call.1} parent=1 // loop_footer_branch
      %14 = sbr.rel target = $region3
    $region8: #{tpu_custom_call.1} parent=1 // loop_exit
      _
    %585 = vsyncpa [#allocation3], 1
    %s586 = scalar_lea.sflag [#allocation3], 1
    %587 = vsyncpa %s586, 1
    %588 = vsyncpa [#allocation4], 1
    %s589 = scalar_lea.sflag [#allocation4], 1
    %590 = vsyncpa %s589, 1

</llo_original>
